<compile_context>
chip_gen: v5e
topology: v5e:2x2
jax: 0.10.0
libtpu: 0.0.40
codegen_flags: <defaults>
</compile_context>

<pallas_src>
import jax
import jax.numpy as jnp
from jax.experimental import pallas as pl
from jax.experimental.pallas import tpu as pltpu

P = 16          # padded feature width (10 -> 16, 5 -> 16); sublane-aligned
N_LAYERS = 4


def toy_mp_kernel(w_ref, b_ref, x_ref, o_ref):
    # x_ref: [P, TB] feature-major tile (batch on the 128-lane axis).
    # w_ref: [4, P, P] packed weights; b_ref: [4, P, 1] packed biases.
    h = x_ref[...].astype(jnp.float32)
    for i in range(N_LAYERS - 1):                      # net0..net2 + ReLU
        h = jnp.dot(w_ref[i], h, preferred_element_type=jnp.float32) + b_ref[i]
        h = jnp.maximum(h, 0.0)
    y = (jnp.dot(w_ref[N_LAYERS - 1], h, preferred_element_type=jnp.float32)
         + b_ref[N_LAYERS - 1])                        # net3 (no activation)
    o_ref[...] = y.astype(o_ref.dtype)


def pack_params(params, dtype=jnp.float32):
    """One-time packing of [(W[out,in], b[out]), ...] into 2 padded slabs."""
    n = len(params)
    w_packed = jnp.zeros((n, P, P), dtype)
    b_packed = jnp.zeros((n, P, 1), dtype)
    for i, (w, b) in enumerate(params):
        out_d, in_d = w.shape
        w_packed = w_packed.at[i, :out_d, :in_d].set(w.astype(dtype))
        b_packed = b_packed.at[i, :out_d, 0].set(b.astype(dtype))
    return w_packed, b_packed


def toy_mp_forward(x, w_packed, b_packed, out_dim=5, tb=512):
    """x: [B, 10] -> [B, out_dim].  w_packed/b_packed from pack_params()."""
    B, F = x.shape

    # Lane-dense batch: pad to a multiple of 128 and tile at up to `tb`.
    b_pad = max(128, ((B + 127) // 128) * 128)
    TB = min(tb, b_pad)
    b_pad = ((b_pad + TB - 1) // TB) * TB
    grid = (b_pad // TB,)

    # Glue (fuses under jit): pad features to P, batch to b_pad, feature-major.
    x_fm = jnp.zeros((P, b_pad), w_packed.dtype)
    x_fm = x_fm.at[:F, :B].set(x.astype(w_packed.dtype).T)

    itemsize = jnp.dtype(w_packed.dtype).itemsize
    flops = 2 * N_LAYERS * P * P * b_pad
    bytes_accessed = (itemsize * (x_fm.size + w_packed.size + b_packed.size)
                      + 4 * P * b_pad)

    y_fm = pl.pallas_call(
        toy_mp_kernel,
        out_shape=jax.ShapeDtypeStruct((P, b_pad), jnp.float32),
        grid=grid,
        in_specs=[
            pl.BlockSpec((N_LAYERS, P, P), lambda i: (0, 0, 0)),  # weights slab
            pl.BlockSpec((N_LAYERS, P, 1), lambda i: (0, 0, 0)),  # bias slab
            pl.BlockSpec((P, TB), lambda i: (0, i)),              # activations
        ],
        out_specs=pl.BlockSpec((P, TB), lambda i: (0, i)),
        compiler_params=pltpu.CompilerParams(
            dimension_semantics=("parallel",)),
        cost_estimate=pl.CostEstimate(
            flops=flops, transcendentals=0, bytes_accessed=bytes_accessed),
    )(w_packed, b_packed, x_fm)

    # Single layout fixup back to the PyTorch contract [B, out_dim].
    return y_fm[:out_dim, :B].T


def init_params(key):
    """Deterministic init matching torch.nn.Linear shapes:
    net0: (10,10), net1: (10,10), net2: (10,10), net3: (5,10)."""
    dims = [(10, 10), (10, 10), (10, 10), (5, 10)]
    params = []
    for (out_d, in_d) in dims:
        kw, kb, key = jax.random.split(key, 3)
        bound = 1.0 / jnp.sqrt(in_d)
        w = jax.random.uniform(kw, (out_d, in_d), jnp.float32, -bound, bound)
        b = jax.random.uniform(kb, (out_d,), jnp.float32, -bound, bound)
        params.append((w, b))
    return params


def reference_forward(x, params):
    h = x
    for i, (w, b) in enumerate(params):
        h = h @ w.T + b
        if i < len(params) - 1:
            h = jnp.maximum(h, 0.0)
    return h


if __name__ == "__main__":
    # TODO(synk): the original module's per-layer `.to(device)` model
    # parallelism has no single-kernel equivalent; the 4 layers are fused on
    # one core instead (cross-device staging would need remote-DMA P6).
    key = jax.random.PRNGKey(0)
    kx, kp = jax.random.split(key)

    B = 8
    x = jax.random.normal(kx, (B, 10), jnp.float32)
    params = init_params(kp)

    # One-time packing (hoisted out of the forward path).
    w_packed, b_packed = pack_params(params)

    fwd = jax.jit(toy_mp_forward)
    out = jax.block_until_ready(fwd(x, w_packed, b_packed))

    ref = reference_forward(x, params)
    assert out.shape == (B, 5), out.shape
    assert jnp.allclose(out, ref, atol=1e-5, rtol=1e-5), "mismatch vs reference"

    print("KERNEL_OK")
</pallas_src>

<mosaic_0001>
module attributes {stable_mosaic.version = 11 : i64} {
  func.func @toy_mp_kernel(%arg0: i32, %arg1: memref<4x16x16xf32, #tpu.memory_space<vmem>>, %arg2: memref<4x16x1xf32, #tpu.memory_space<vmem>>, %arg3: memref<16x128xf32, #tpu.memory_space<vmem>>, %arg4: memref<16x128xf32, #tpu.memory_space<vmem>>) attributes {dimension_semantics = [#tpu.dimension_semantics<parallel>], iteration_bounds = array<i64: 1>, scalar_prefetch = 0 : i64, scratch_operands = 0 : i64, tpu.core_type = #tpu.core_type<tc>, window_params = [{pipeline_mode = #tpu.pipeline_mode<synchronous>, transform_indices = @transform_0, window_bounds = array<i64: 4, 16, 16>}, {pipeline_mode = #tpu.pipeline_mode<synchronous>, transform_indices = @transform_1, window_bounds = array<i64: 4, 16, 1>}, {transform_indices = @transform_2, window_bounds = array<i64: 16, 128>}, {transform_indices = @transform_3, window_bounds = array<i64: 16, 128>}]} {
    %c0 = arith.constant 0 : index
    %c0_0 = arith.constant 0 : index
    %0 = vector.load %arg3[%c0, %c0_0] : memref<16x128xf32, #tpu.memory_space<vmem>>, vector<16x128xf32>
    %c0_1 = arith.constant 0 : index
    %c0_2 = arith.constant 0 : index
    %c0_3 = arith.constant 0 : index
    %1 = vector.load %arg1[%c0_1, %c0_2, %c0_3] : memref<4x16x16xf32, #tpu.memory_space<vmem>>, vector<1x16x16xf32>
    %2 = vector.shape_cast %1 : vector<1x16x16xf32> to vector<16x16xf32>
    %cst = arith.constant dense<0.000000e+00> : vector<16x128xf32>
    %3 = tpu.matmul %2, %0, %cst {dimension_numbers = #tpu.dot_dimension_numbers<[1], [0], [0], [1], [0, 0, 1, 1], [], []>} : vector<16x16xf32>, vector<16x128xf32>, vector<16x128xf32> -> vector<16x128xf32>
    %c0_4 = arith.constant 0 : index
    %c0_5 = arith.constant 0 : index
    %c0_6 = arith.constant 0 : index
    %4 = vector.load %arg2[%c0_4, %c0_5, %c0_6] : memref<4x16x1xf32, #tpu.memory_space<vmem>>, vector<1x16x1xf32>
    %5 = vector.shape_cast %4 : vector<1x16x1xf32> to vector<16x1xf32>
    %6 = vector.broadcast %5 : vector<16x1xf32> to vector<16x128xf32>
    %7 = arith.addf %3, %6 : vector<16x128xf32>
    %cst_7 = arith.constant 0.000000e+00 : f32
    %8 = vector.broadcast %cst_7 : f32 to vector<16x128xf32>
    %9 = arith.maximumf %7, %8 : vector<16x128xf32>
    %c1 = arith.constant 1 : index
    %c0_8 = arith.constant 0 : index
    %c0_9 = arith.constant 0 : index
    %10 = vector.load %arg1[%c1, %c0_8, %c0_9] : memref<4x16x16xf32, #tpu.memory_space<vmem>>, vector<1x16x16xf32>
    %11 = vector.shape_cast %10 : vector<1x16x16xf32> to vector<16x16xf32>
    %cst_10 = arith.constant dense<0.000000e+00> : vector<16x128xf32>
    %12 = tpu.matmul %11, %9, %cst_10 {dimension_numbers = #tpu.dot_dimension_numbers<[1], [0], [0], [1], [0, 0, 1, 1], [], []>} : vector<16x16xf32>, vector<16x128xf32>, vector<16x128xf32> -> vector<16x128xf32>
    %c1_11 = arith.constant 1 : index
    %c0_12 = arith.constant 0 : index
    %c0_13 = arith.constant 0 : index
    %13 = vector.load %arg2[%c1_11, %c0_12, %c0_13] : memref<4x16x1xf32, #tpu.memory_space<vmem>>, vector<1x16x1xf32>
    %14 = vector.shape_cast %13 : vector<1x16x1xf32> to vector<16x1xf32>
    %15 = vector.broadcast %14 : vector<16x1xf32> to vector<16x128xf32>
    %16 = arith.addf %12, %15 : vector<16x128xf32>
    %cst_14 = arith.constant 0.000000e+00 : f32
    %17 = vector.broadcast %cst_14 : f32 to vector<16x128xf32>
    %18 = arith.maximumf %16, %17 : vector<16x128xf32>
    %c2 = arith.constant 2 : index
    %c0_15 = arith.constant 0 : index
    %c0_16 = arith.constant 0 : index
    %19 = vector.load %arg1[%c2, %c0_15, %c0_16] : memref<4x16x16xf32, #tpu.memory_space<vmem>>, vector<1x16x16xf32>
    %20 = vector.shape_cast %19 : vector<1x16x16xf32> to vector<16x16xf32>
    %cst_17 = arith.constant dense<0.000000e+00> : vector<16x128xf32>
    %21 = tpu.matmul %20, %18, %cst_17 {dimension_numbers = #tpu.dot_dimension_numbers<[1], [0], [0], [1], [0, 0, 1, 1], [], []>} : vector<16x16xf32>, vector<16x128xf32>, vector<16x128xf32> -> vector<16x128xf32>
    %c2_18 = arith.constant 2 : index
    %c0_19 = arith.constant 0 : index
    %c0_20 = arith.constant 0 : index
    %22 = vector.load %arg2[%c2_18, %c0_19, %c0_20] : memref<4x16x1xf32, #tpu.memory_space<vmem>>, vector<1x16x1xf32>
    %23 = vector.shape_cast %22 : vector<1x16x1xf32> to vector<16x1xf32>
    %24 = vector.broadcast %23 : vector<16x1xf32> to vector<16x128xf32>
    %25 = arith.addf %21, %24 : vector<16x128xf32>
    %cst_21 = arith.constant 0.000000e+00 : f32
    %26 = vector.broadcast %cst_21 : f32 to vector<16x128xf32>
    %27 = arith.maximumf %25, %26 : vector<16x128xf32>
    %c3 = arith.constant 3 : index
    %c0_22 = arith.constant 0 : index
    %c0_23 = arith.constant 0 : index
    %28 = vector.load %arg1[%c3, %c0_22, %c0_23] : memref<4x16x16xf32, #tpu.memory_space<vmem>>, vector<1x16x16xf32>
    %29 = vector.shape_cast %28 : vector<1x16x16xf32> to vector<16x16xf32>
    %cst_24 = arith.constant dense<0.000000e+00> : vector<16x128xf32>
    %30 = tpu.matmul %29, %27, %cst_24 {dimension_numbers = #tpu.dot_dimension_numbers<[1], [0], [0], [1], [0, 0, 1, 1], [], []>} : vector<16x16xf32>, vector<16x128xf32>, vector<16x128xf32> -> vector<16x128xf32>
    %c3_25 = arith.constant 3 : index
    %c0_26 = arith.constant 0 : index
    %c0_27 = arith.constant 0 : index
    %31 = vector.load %arg2[%c3_25, %c0_26, %c0_27] : memref<4x16x1xf32, #tpu.memory_space<vmem>>, vector<1x16x1xf32>
    %32 = vector.shape_cast %31 : vector<1x16x1xf32> to vector<16x1xf32>
    %33 = vector.broadcast %32 : vector<16x1xf32> to vector<16x128xf32>
    %34 = arith.addf %30, %33 : vector<16x128xf32>
    %c0_28 = arith.constant 0 : index
    %c0_29 = arith.constant 0 : index
    %35 = vector.load %arg4[%c0_28, %c0_29] : memref<16x128xf32, #tpu.memory_space<vmem>>, vector<16x128xf32>
    tpu.vector_store %arg4[%c0_28, %c0_29], %34 {strides = array<i32>} : memref<16x128xf32, #tpu.memory_space<vmem>>, vector<16x128xf32>,
    return
  }
  func.func @transform_0(%arg0: i32) -> (i32, i32, i32) {
    %c0_i32 = arith.constant 0 : i32
    %c0_i32_0 = arith.constant 0 : i32
    %c0_i32_1 = arith.constant 0 : i32
    %c0_i32_2 = arith.constant 0 : i32
    return %c0_i32, %c0_i32_0, %c0_i32_1 : i32, i32, i32
  }
  func.func @transform_1(%arg0: i32) -> (i32, i32, i32) {
    %c0_i32 = arith.constant 0 : i32
    %c0_i32_0 = arith.constant 0 : i32
    %c0_i32_1 = arith.constant 0 : i32
    %c0_i32_2 = arith.constant 0 : i32
    return %c0_i32, %c0_i32_0, %c0_i32_1 : i32, i32, i32
  }
  func.func @transform_2(%arg0: i32) -> (i32, i32) {
    %c0_i32 = arith.constant 0 : i32
    %c0_i32_0 = arith.constant 0 : i32
    return %c0_i32, %arg0 : i32, i32
  }
  func.func @transform_3(%arg0: i32) -> (i32, i32) {
    %c0_i32 = arith.constant 0 : i32
    %c0_i32_0 = arith.constant 0 : i32
    return %c0_i32, %arg0 : i32, i32
  }
}

</mosaic_0001>

<llo_original>
// kernel: toy_mp_forward.1
$region0: #{toy_mp_forward.1}
  #allocation0 [shape = 'u32[]', space=smem, size = 0x4, offset = 0x4, fixed_abs, tag = 'smem constant byte address 0x4 - core index']
  #allocation1 [shape = 'u32[72,128]{1,0:T(1,128)}', space=vmem, size = 0x9000, scoped, tag = 'internal scratch']
  %s0 = inlined_call_operand.vmem [shape: f32[4,16,16], index: 0, kind: input, shape index: {}]
  %s1 = inlined_call_operand.vmem [shape: f32[4,16,1], index: 1, kind: input, shape index: {}]
  %s2 = inlined_call_operand.vmem [shape: f32[16,128], index: 2, kind: input, shape index: {}]
  %s3 = inlined_call_operand.vmem [shape: f32[16,128], index: 3, kind: output, shape index: {}]
  %s4 = sld [smem:[#allocation0]]
  $region22: #{toy_mp_forward.1} parent=0
    _
  %s6 = ssub.s32 1, %s4
  %s7 = scalar_select 0, %s6, %s4
  // Predicated region
  $region2: #{toy_mp_forward.1} parent=0 // pred_check
    _
  $region3: #{toy_mp_forward.1} parent=0 // pred_check_branch
    %9 = sbr.rel (0) target = $region5
  $region4: #{toy_mp_forward.1} parent=0 // pred_region
    _
  $region5: #{toy_mp_forward.1} parent=0 // pred_fallthru
    _
  // Predicated region
  $region6: #{toy_mp_forward.1} parent=0 // pred_check
    _
  $region7: #{toy_mp_forward.1} parent=0 // pred_check_branch
    %11 = sbr.rel (0) target = $region9
  $region8: #{toy_mp_forward.1} parent=0 // pred_region
    _
  $region9: #{toy_mp_forward.1} parent=0 // pred_fallthru
    _
  // Predicated region
  $region10: #{toy_mp_forward.1} parent=0 // pred_check
    _
  $region11: #{toy_mp_forward.1} parent=0 // pred_check_branch
    %13 = sbr.rel (0) target = $region13
  $region12: #{toy_mp_forward.1} parent=0 // pred_region
    _
  $region13: #{toy_mp_forward.1} parent=0 // pred_fallthru
    _
  %v14 = vld [vmem:[%s2] sm:$0xff]
  %v15 = vld [vmem:[%s2 + $0x8] sm:$0xff]
  %v16 = vld [vmem:[%s0] sm:$0xff]
  %v17 = vld [vmem:[%s0 + $0x8] sm:$0xff]
  %v18 = vld [vmem:[%s1] sm:$0xff]
  %v19 = vld [vmem:[%s1 + $0x8] sm:$0xff]
  %21 = vset.pattern.permute.xlu0 0
  %22 = vperm.xlu0 %21, %v18
  %v23 = vpop.permute.xlu0 %22
  %26 = vset.pattern.permute.xlu0 0
  %27 = vperm.xlu0 %26, %v19
  %v28 = vpop.permute.xlu0 %27
  %vm30 = vcmask 130048
  %v32 = vsel %vm30, %v16, 0
  %v35 = vsel %vm30, %v17, 0
  %37 = vmatpush.msra.mxu0 0.0
  %38 = vmatpush.msra.mxu0 0.0
  %39 = vmatpush.msra.mxu0 0.0
  %40 = vmatpush.msra.mxu0 0.0
  %41 = vmatpush.msra.mxu0 0.0
  %42 = vmatpush.msra.mxu0 0.0
  %43 = vmatpush.msra.mxu0 0.0
  %44 = vmatpush.msra.mxu0 0.0
  %45 = vmatpush.msra.mxu0 0.0
  %46 = vmatpush.msra.mxu0 0.0
  %47 = vmatpush.msra.mxu0 0.0
  %48 = vmatpush.msra.mxu0 0.0
  %49 = vmatpush.msra.mxu0 0.0
  %50 = vmatpush.msra.mxu0 0.0
  %51 = vmatpush.msra.mxu0 %v15
  %52 = vmatpush.msra.mxu0 %v14
  %53 = vmatmul.f32.gmra.mxu0 %v32
  %v54 = vpop.f32.mrf.mxu0
  %v55 = vadd.f32 %v23, %v54
  %56 = vmatmul.f32.gmra.mxu0 %v35
  %v57 = vpop.f32.mrf.mxu0
  %v58 = vadd.f32 %v28, %v57
  %59 = vdwg.mxu0
  %v60 = vmax.f32 %v55, 0.0
  %v61 = vmax.f32 %v58, 0.0
  %s62 = scalar_lea.vmem %s0, 16
  %v63 = vld [vmem:[%s62] sm:$0xff]
  %v64 = vld [vmem:[%s62 + $0x8] sm:$0xff]
  %s65 = scalar_lea.vmem %s1, 16
  %v66 = vld [vmem:[%s65] sm:$0xff]
  %v67 = vld [vmem:[%s65 + $0x8] sm:$0xff]
  %69 = vset.pattern.permute.xlu0 0
  %70 = vperm.xlu0 %69, %v66
  %v71 = vpop.permute.xlu0 %70
  %74 = vset.pattern.permute.xlu0 0
  %75 = vperm.xlu0 %74, %v67
  %v76 = vpop.permute.xlu0 %75
  %v79 = vsel %vm30, %v63, 0
  %v82 = vsel %vm30, %v64, 0
  %84 = vmatpush.msra.mxu0 0.0
  %85 = vmatpush.msra.mxu0 0.0
  %86 = vmatpush.msra.mxu0 0.0
  %87 = vmatpush.msra.mxu0 0.0
  %88 = vmatpush.msra.mxu0 0.0
  %89 = vmatpush.msra.mxu0 0.0
  %90 = vmatpush.msra.mxu0 0.0
  %91 = vmatpush.msra.mxu0 0.0
  %92 = vmatpush.msra.mxu0 0.0
  %93 = vmatpush.msra.mxu0 0.0
  %94 = vmatpush.msra.mxu0 0.0
  %95 = vmatpush.msra.mxu0 0.0
  %96 = vmatpush.msra.mxu0 0.0
  %97 = vmatpush.msra.mxu0 0.0
  %98 = vmatpush.msra.mxu0 %v61
  %99 = vmatpush.msra.mxu0 %v60
  %100 = vmatmul.f32.gmra.mxu0 %v79
  %v101 = vpop.f32.mrf.mxu0
  %v102 = vadd.f32 %v71, %v101
  %103 = vmatmul.f32.gmra.mxu0 %v82
  %v104 = vpop.f32.mrf.mxu0
  %v105 = vadd.f32 %v76, %v104
  %106 = vdwg.mxu0
  %v107 = vmax.f32 %v102, 0.0
  %v108 = vmax.f32 %v105, 0.0
  %s109 = scalar_lea.vmem %s0, 32
  %v110 = vld [vmem:[%s109] sm:$0xff]
  %v111 = vld [vmem:[%s109 + $0x8] sm:$0xff]
  %s112 = scalar_lea.vmem %s1, 32
  %v113 = vld [vmem:[%s112] sm:$0xff]
  %v114 = vld [vmem:[%s112 + $0x8] sm:$0xff]
  %116 = vset.pattern.permute.xlu0 0
  %117 = vperm.xlu0 %116, %v113
  %v118 = vpop.permute.xlu0 %117
  %121 = vset.pattern.permute.xlu0 0
  %122 = vperm.xlu0 %121, %v114
  %v123 = vpop.permute.xlu0 %122
  %v126 = vsel %vm30, %v110, 0
  %v129 = vsel %vm30, %v111, 0
  %131 = vmatpush.msra.mxu0 0.0
  %132 = vmatpush.msra.mxu0 0.0
  %133 = vmatpush.msra.mxu0 0.0
  %134 = vmatpush.msra.mxu0 0.0
  %135 = vmatpush.msra.mxu0 0.0
  %136 = vmatpush.msra.mxu0 0.0
  %137 = vmatpush.msra.mxu0 0.0
  %138 = vmatpush.msra.mxu0 0.0
  %139 = vmatpush.msra.mxu0 0.0
  %140 = vmatpush.msra.mxu0 0.0
  %141 = vmatpush.msra.mxu0 0.0
  %142 = vmatpush.msra.mxu0 0.0
  %143 = vmatpush.msra.mxu0 0.0
  %144 = vmatpush.msra.mxu0 0.0
  %145 = vmatpush.msra.mxu0 %v108
  %146 = vmatpush.msra.mxu0 %v107
  %147 = vmatmul.f32.gmra.mxu0 %v126
  %v148 = vpop.f32.mrf.mxu0
  %v149 = vadd.f32 %v118, %v148
  %150 = vmatmul.f32.gmra.mxu0 %v129
  %v151 = vpop.f32.mrf.mxu0
  %v152 = vadd.f32 %v123, %v151
  %153 = vdwg.mxu0
  %v154 = vmax.f32 %v149, 0.0
  %v155 = vmax.f32 %v152, 0.0
  %s156 = scalar_lea.vmem %s0, 48
  %v157 = vld [vmem:[%s156] sm:$0xff]
  %v158 = vld [vmem:[%s156 + $0x8] sm:$0xff]
  %s159 = scalar_lea.vmem %s1, 48
  %v160 = vld [vmem:[%s159] sm:$0xff]
  %v161 = vld [vmem:[%s159 + $0x8] sm:$0xff]
  %163 = vset.pattern.permute.xlu0 0
  %164 = vperm.xlu0 %163, %v160
  %v165 = vpop.permute.xlu0 %164
  %168 = vset.pattern.permute.xlu0 0
  %169 = vperm.xlu0 %168, %v161
  %v170 = vpop.permute.xlu0 %169
  %v173 = vsel %vm30, %v157, 0
  %v176 = vsel %vm30, %v158, 0
  %178 = vmatpush.msra.mxu0 0.0
  %179 = vmatpush.msra.mxu0 0.0
  %180 = vmatpush.msra.mxu0 0.0
  %181 = vmatpush.msra.mxu0 0.0
  %182 = vmatpush.msra.mxu0 0.0
  %183 = vmatpush.msra.mxu0 0.0
  %184 = vmatpush.msra.mxu0 0.0
  %185 = vmatpush.msra.mxu0 0.0
  %186 = vmatpush.msra.mxu0 0.0
  %187 = vmatpush.msra.mxu0 0.0
  %188 = vmatpush.msra.mxu0 0.0
  %189 = vmatpush.msra.mxu0 0.0
  %190 = vmatpush.msra.mxu0 0.0
  %191 = vmatpush.msra.mxu0 0.0
  %192 = vmatpush.msra.mxu0 %v155
  %193 = vmatpush.msra.mxu0 %v154
  %194 = vmatmul.f32.gmra.mxu0 %v173
  %v195 = vpop.f32.mrf.mxu0
  %v196 = vadd.f32 %v165, %v195
  %197 = vmatmul.f32.gmra.mxu0 %v176
  %v198 = vpop.f32.mrf.mxu0
  %v199 = vadd.f32 %v170, %v198
  %200 = vdwg.mxu0
  %201 = vst [vmem:[%s3] sm:$0xff] %v196
  %202 = vst [vmem:[%s3 + $0x8] sm:$0xff] %v199
  // Predicated region
  $region14: #{toy_mp_forward.1} parent=0 // pred_check
    _
  $region15: #{toy_mp_forward.1} parent=0 // pred_check_branch
    %204 = sbr.rel (0) target = $region17
  $region16: #{toy_mp_forward.1} parent=0 // pred_region
    _
  $region17: #{toy_mp_forward.1} parent=0 // pred_fallthru
    _
  // Predicated region
  $region18: #{toy_mp_forward.1} parent=0 // pred_check
    _
  $region19: #{toy_mp_forward.1} parent=0 // pred_check_branch
    %206 = sbr.rel (0) target = $region21
  $region20: #{toy_mp_forward.1} parent=0 // pred_region
    _
  $region21: #{toy_mp_forward.1} parent=0 // pred_fallthru
    _

</llo_original>
